<compile_context>
chip_gen: v5e
topology: v5e:2x2
jax: 0.10.0
libtpu: 0.0.40
codegen_flags: <defaults>
</compile_context>

<pallas_src>
import jax
import jax.numpy as jnp
from jax.experimental import pallas as pl
from jax.experimental.pallas import tpu as pltpu

LANE = 128
SUB = 8
MAX_BATCH_TILE = 1024  # rows per grid step; safe for v5e/v6e/v7x VMEM budgets


def _round_up(n, m):
    return ((n + m - 1) // m) * m


def _pad2d(a, rows, cols, dtype):
    r, c = a.shape
    return jnp.pad(a, ((0, rows - r), (0, cols - c))).astype(dtype)


def _make_mlp_kernel(in_size, use_fma):
    """Kernel over one batch tile. Weights are full (padded) VMEM-resident blocks."""

    def kernel(x_ref, w1_ref, b1_ref, w2_ref, b2_ref, w3_ref, b3_ref, o_ref):
        # ---- layer 1 ----
        if use_fma:
            # K (= in_size) is tiny: skip the mostly-zero-padded MXU pass and do
            # `in_size` rank-1 VPU FMAs over the real input columns (f32).
            x = x_ref[...].astype(jnp.float32)
            w1 = w1_ref[...].astype(jnp.float32)
            acc = x[:, 0:1] * w1[0:1, :]
            for k in range(1, in_size):  # static unroll
                acc = acc + x[:, k:k + 1] * w1[k:k + 1, :]
            h = acc + b1_ref[...]
        else:
            h = jnp.dot(x_ref[...], w1_ref[...],
                        preferred_element_type=jnp.float32)
            h = h + b1_ref[...]
        h = jnp.maximum(h, 0.0).astype(w2_ref.dtype)

        # ---- layer 2 (MXU: bf16 operands, f32 accumulation) ----
        h = jnp.dot(h, w2_ref[...], preferred_element_type=jnp.float32)
        h = jnp.maximum(h + b2_ref[...], 0.0).astype(w3_ref.dtype)

        # ---- layer 3 (MXU, no activation) ----
        o = jnp.dot(h, w3_ref[...], preferred_element_type=jnp.float32)
        o_ref[...] = (o + b3_ref[...]).astype(o_ref.dtype)

    return kernel


def prepare_params(params, compute_dtype=jnp.bfloat16):
    """Pad weights to lane/sublane-aligned shapes and cast once (hoisted)."""
    (w1, b1), (w2, b2), (w3, b3) = params["l1"], params["l2"], params["l3"]
    in_size, hidden = w1.shape
    out_size = w3.shape[1]
    Fp = max(LANE, _round_up(in_size, LANE))
    Hp = max(LANE, _round_up(hidden, LANE))
    Op = max(LANE, _round_up(out_size, LANE))
    prepped = (
        _pad2d(w1, Fp, Hp, compute_dtype),
        _pad2d(b1.reshape(1, -1), 1, Hp, jnp.float32),
        _pad2d(w2, Hp, Hp, compute_dtype),
        _pad2d(b2.reshape(1, -1), 1, Hp, jnp.float32),
        _pad2d(w3, Hp, Op, compute_dtype),
        _pad2d(b3.reshape(1, -1), 1, Op, jnp.float32),
    )
    dims = dict(in_size=in_size, hidden=hidden, out_size=out_size,
                Fp=Fp, Hp=Hp, Op=Op)
    return prepped, dims


def _forward_padded(x, prepped, dims, compute_dtype=jnp.bfloat16):
    w1_p, b1_p, w2_p, b2_p, w3_p, b3_p = prepped
    B = x.shape[0]
    in_size, hidden, out_size = dims["in_size"], dims["hidden"], dims["out_size"]
    Fp, Hp, Op = dims["Fp"], dims["Hp"], dims["Op"]

    # Batch tiling: one tile for small B, 1024-row tiles (pipelined) for large B.
    TB = min(MAX_BATCH_TILE, _round_up(B, SUB))
    Bp = _round_up(B, TB)
    grid = (Bp // TB,)

    x_p = _pad2d(x, Bp, Fp, compute_dtype)

    use_fma = in_size <= 8
    kernel = _make_mlp_kernel(in_size, use_fma)

    def resident(shape):
        # Weights/biases: same block for every grid step -> stay in VMEM.
        return pl.BlockSpec(shape, lambda i: (0, 0))

    itemsize = jnp.dtype(compute_dtype).itemsize
    cost = pl.CostEstimate(
        flops=2 * B * (in_size * hidden + hidden * hidden + hidden * out_size),
        transcendentals=0,
        bytes_accessed=(Bp * Fp * itemsize
                        + sum(a.size * a.dtype.itemsize for a in prepped)
                        + Bp * Op * 4),
    )

    out_p = pl.pallas_call(
        kernel,
        out_shape=jax.ShapeDtypeStruct((Bp, Op), jnp.float32),
        grid=grid,
        in_specs=[
            pl.BlockSpec((TB, Fp), lambda i: (i, 0)),   # x: streamed per batch tile
            resident((Fp, Hp)), resident((1, Hp)),      # w1, b1
            resident((Hp, Hp)), resident((1, Hp)),      # w2, b2
            resident((Hp, Op)), resident((1, Op)),      # w3, b3
        ],
        out_specs=pl.BlockSpec((TB, Op), lambda i: (i, 0)),
        compiler_params=pltpu.CompilerParams(
            dimension_semantics=("parallel",),
            vmem_limit_bytes=32 * 1024 * 1024,
        ),
        cost_estimate=cost,
    )(x_p, w1_p, b1_p, w2_p, b2_p, w3_p, b3_p)

    return out_p[:B, :out_size]


def make_qfunction(params, compute_dtype=jnp.bfloat16):
    """Pad/cast params once, return a jitted forward(x) closure."""
    prepped, dims = prepare_params(params, compute_dtype)

    @jax.jit
    def forward(x):
        return _forward_padded(x, prepped, dims, compute_dtype)

    return forward


def qfunction_forward(x, params, compute_dtype=jnp.bfloat16):
    """One-shot convenience wrapper (prefer make_qfunction for repeated calls)."""
    prepped, dims = prepare_params(params, compute_dtype)
    return _forward_padded(x, prepped, dims, compute_dtype)


def init_params(key, input_size=2, hidden_size=64, output_size=10):
    """PyTorch-style Linear init: U(-1/sqrt(fan_in), 1/sqrt(fan_in)); W stored [in, out]."""
    def linear(k, fan_in, fan_out):
        kw, kb = jax.random.split(k)
        bound = 1.0 / jnp.sqrt(fan_in)
        w = jax.random.uniform(kw, (fan_in, fan_out), jnp.float32, -bound, bound)
        b = jax.random.uniform(kb, (fan_out,), jnp.float32, -bound, bound)
        return w, b

    k1, k2, k3 = jax.random.split(key, 3)
    return {
        "l1": linear(k1, input_size, hidden_size),
        "l2": linear(k2, hidden_size, hidden_size),
        "l3": linear(k3, hidden_size, output_size),
    }


def reference_forward_f32(x, params):
    (w1, b1), (w2, b2), (w3, b3) = params["l1"], params["l2"], params["l3"]
    h = jnp.maximum(x @ w1 + b1, 0.0)
    h = jnp.maximum(h @ w2 + b2, 0.0)
    return h @ w3 + b3


def reference_forward_bf16(x, params):
    # Mirrors the kernel's numerics: bf16-quantized operands, f32 accumulation.
    def q(a):
        return a.astype(jnp.bfloat16).astype(jnp.float32)

    (w1, b1), (w2, b2), (w3, b3) = params["l1"], params["l2"], params["l3"]
    h = jnp.maximum(q(x) @ q(w1) + b1, 0.0)
    h = jnp.maximum(q(h) @ q(w2) + b2, 0.0)
    return q(h) @ q(w3) + b3


if __name__ == "__main__":
    key = jax.random.PRNGKey(0)
    kp, kx = jax.random.split(key)

    input_size, hidden_size, output_size = 2, 64, 10
    batch = 8

    params = init_params(kp, input_size, hidden_size, output_size)
    x = jax.random.normal(kx, (batch, input_size), jnp.float32)

    forward = make_qfunction(params)
    out = jax.block_until_ready(forward(x))

    assert out.shape == (batch, output_size), out.shape

    ref_q = reference_forward_bf16(x, params)   # same bf16 quantization as kernel
    ref_f = reference_forward_f32(x, params)    # pure f32 semantics (loose check)
    err_q = float(jnp.max(jnp.abs(out - ref_q)))
    err_f = float(jnp.max(jnp.abs(out - ref_f)))
    assert jnp.allclose(out, ref_q, atol=2e-3, rtol=2e-3), err_q
    assert jnp.allclose(out, ref_f, atol=5e-2, rtol=5e-2), err_f
    print("KERNEL_OK")
</pallas_src>

<mosaic_0001>
module attributes {stable_mosaic.version = 11 : i64} {
  func.func @kernel(%arg0: i32, %arg1: memref<8x128xbf16, #tpu.memory_space<vmem>>, %arg2: memref<128x128xbf16, #tpu.memory_space<vmem>>, %arg3: memref<1x128xf32, #tpu.memory_space<vmem>>, %arg4: memref<128x128xbf16, #tpu.memory_space<vmem>>, %arg5: memref<1x128xf32, #tpu.memory_space<vmem>>, %arg6: memref<128x128xbf16, #tpu.memory_space<vmem>>, %arg7: memref<1x128xf32, #tpu.memory_space<vmem>>, %arg8: memref<8x128xf32, #tpu.memory_space<vmem>>) attributes {dimension_semantics = [#tpu.dimension_semantics<parallel>], iteration_bounds = array<i64: 1>, scalar_prefetch = 0 : i64, scratch_operands = 0 : i64, tpu.core_type = #tpu.core_type<tc>, window_params = [{transform_indices = @transform_0, window_bounds = array<i64: 8, 128>}, {pipeline_mode = #tpu.pipeline_mode<synchronous>, transform_indices = @transform_1, window_bounds = array<i64: 128, 128>}, {pipeline_mode = #tpu.pipeline_mode<synchronous>, transform_indices = @transform_2, window_bounds = array<i64: 1, 128>}, {pipeline_mode = #tpu.pipeline_mode<synchronous>, transform_indices = @transform_3, window_bounds = array<i64: 128, 128>}, {pipeline_mode = #tpu.pipeline_mode<synchronous>, transform_indices = @transform_4, window_bounds = array<i64: 1, 128>}, {pipeline_mode = #tpu.pipeline_mode<synchronous>, transform_indices = @transform_5, window_bounds = array<i64: 128, 128>}, {pipeline_mode = #tpu.pipeline_mode<synchronous>, transform_indices = @transform_6, window_bounds = array<i64: 1, 128>}, {transform_indices = @transform_7, window_bounds = array<i64: 8, 128>}]} {
    %c0 = arith.constant 0 : index
    %c0_0 = arith.constant 0 : index
    %0 = vector.load %arg1[%c0, %c0_0] : memref<8x128xbf16, #tpu.memory_space<vmem>>, vector<8x128xbf16>
    %1 = arith.extf %0 : vector<8x128xbf16> to vector<8x128xf32>
    %c0_1 = arith.constant 0 : index
    %c0_2 = arith.constant 0 : index
    %2 = vector.load %arg2[%c0_1, %c0_2] : memref<128x128xbf16, #tpu.memory_space<vmem>>, vector<128x128xbf16>
    %3 = arith.extf %2 : vector<128x128xbf16> to vector<128x128xf32>
    %4 = vector.extract_strided_slice %1 {offsets = [0, 0], sizes = [8, 1], strides = [1, 1]} : vector<8x128xf32> to vector<8x1xf32>
    %5 = vector.extract_strided_slice %3 {offsets = [0, 0], sizes = [1, 128], strides = [1, 1]} : vector<128x128xf32> to vector<1x128xf32>
    %6 = vector.broadcast %4 : vector<8x1xf32> to vector<8x128xf32>
    %7 = vector.broadcast %5 : vector<1x128xf32> to vector<8x128xf32>
    %8 = arith.mulf %6, %7 : vector<8x128xf32>
    %9 = vector.extract_strided_slice %1 {offsets = [0, 1], sizes = [8, 1], strides = [1, 1]} : vector<8x128xf32> to vector<8x1xf32>
    %10 = vector.extract_strided_slice %3 {offsets = [1, 0], sizes = [1, 128], strides = [1, 1]} : vector<128x128xf32> to vector<1x128xf32>
    %11 = vector.broadcast %9 : vector<8x1xf32> to vector<8x128xf32>
    %12 = vector.broadcast %10 : vector<1x128xf32> to vector<8x128xf32>
    %13 = arith.mulf %11, %12 : vector<8x128xf32>
    %14 = arith.addf %8, %13 : vector<8x128xf32>
    %c0_3 = arith.constant 0 : index
    %c0_4 = arith.constant 0 : index
    %15 = vector.load %arg3[%c0_3, %c0_4] : memref<1x128xf32, #tpu.memory_space<vmem>>, vector<1x128xf32>
    %16 = vector.broadcast %15 : vector<1x128xf32> to vector<8x128xf32>
    %17 = arith.addf %14, %16 : vector<8x128xf32>
    %cst = arith.constant 0.000000e+00 : f32
    %18 = vector.broadcast %cst : f32 to vector<8x128xf32>
    %19 = arith.maximumf %17, %18 : vector<8x128xf32>
    %20 = arith.truncf %19 : vector<8x128xf32> to vector<8x128xbf16>
    %c0_5 = arith.constant 0 : index
    %c0_6 = arith.constant 0 : index
    %21 = vector.load %arg4[%c0_5, %c0_6] : memref<128x128xbf16, #tpu.memory_space<vmem>>, vector<128x128xbf16>
    %cst_7 = arith.constant dense<0.000000e+00> : vector<8x128xf32>
    %22 = tpu.matmul %20, %21, %cst_7 {dimension_numbers = #tpu.dot_dimension_numbers<[1], [0], [0], [1], [0, 0, 1, 1], [], []>} : vector<8x128xbf16>, vector<128x128xbf16>, vector<8x128xf32> -> vector<8x128xf32>
    %c0_8 = arith.constant 0 : index
    %c0_9 = arith.constant 0 : index
    %23 = vector.load %arg5[%c0_8, %c0_9] : memref<1x128xf32, #tpu.memory_space<vmem>>, vector<1x128xf32>
    %24 = vector.broadcast %23 : vector<1x128xf32> to vector<8x128xf32>
    %25 = arith.addf %22, %24 : vector<8x128xf32>
    %cst_10 = arith.constant 0.000000e+00 : f32
    %26 = vector.broadcast %cst_10 : f32 to vector<8x128xf32>
    %27 = arith.maximumf %25, %26 : vector<8x128xf32>
    %28 = arith.truncf %27 : vector<8x128xf32> to vector<8x128xbf16>
    %c0_11 = arith.constant 0 : index
    %c0_12 = arith.constant 0 : index
    %29 = vector.load %arg6[%c0_11, %c0_12] : memref<128x128xbf16, #tpu.memory_space<vmem>>, vector<128x128xbf16>
    %cst_13 = arith.constant dense<0.000000e+00> : vector<8x128xf32>
    %30 = tpu.matmul %28, %29, %cst_13 {dimension_numbers = #tpu.dot_dimension_numbers<[1], [0], [0], [1], [0, 0, 1, 1], [], []>} : vector<8x128xbf16>, vector<128x128xbf16>, vector<8x128xf32> -> vector<8x128xf32>
    %c0_14 = arith.constant 0 : index
    %c0_15 = arith.constant 0 : index
    %31 = vector.load %arg7[%c0_14, %c0_15] : memref<1x128xf32, #tpu.memory_space<vmem>>, vector<1x128xf32>
    %32 = vector.broadcast %31 : vector<1x128xf32> to vector<8x128xf32>
    %33 = arith.addf %30, %32 : vector<8x128xf32>
    %c0_16 = arith.constant 0 : index
    %c0_17 = arith.constant 0 : index
    %34 = vector.load %arg8[%c0_16, %c0_17] : memref<8x128xf32, #tpu.memory_space<vmem>>, vector<8x128xf32>
    tpu.vector_store %arg8[%c0_16, %c0_17], %33 {strides = array<i32>} : memref<8x128xf32, #tpu.memory_space<vmem>>, vector<8x128xf32>,
    return
  }
  func.func @transform_0(%arg0: i32) -> (i32, i32) {
    %c0_i32 = arith.constant 0 : i32
    %c0_i32_0 = arith.constant 0 : i32
    return %arg0, %c0_i32 : i32, i32
  }
  func.func @transform_1(%arg0: i32) -> (i32, i32) {
    %c0_i32 = arith.constant 0 : i32
    %c0_i32_0 = arith.constant 0 : i32
    %c0_i32_1 = arith.constant 0 : i32
    return %c0_i32, %c0_i32_0 : i32, i32
  }
  func.func @transform_2(%arg0: i32) -> (i32, i32) {
    %c0_i32 = arith.constant 0 : i32
    %c0_i32_0 = arith.constant 0 : i32
    %c0_i32_1 = arith.constant 0 : i32
    return %c0_i32, %c0_i32_0 : i32, i32
  }
  func.func @transform_3(%arg0: i32) -> (i32, i32) {
    %c0_i32 = arith.constant 0 : i32
    %c0_i32_0 = arith.constant 0 : i32
    %c0_i32_1 = arith.constant 0 : i32
    return %c0_i32, %c0_i32_0 : i32, i32
  }
  func.func @transform_4(%arg0: i32) -> (i32, i32) {
    %c0_i32 = arith.constant 0 : i32
    %c0_i32_0 = arith.constant 0 : i32
    %c0_i32_1 = arith.constant 0 : i32
    return %c0_i32, %c0_i32_0 : i32, i32
  }
  func.func @transform_5(%arg0: i32) -> (i32, i32) {
    %c0_i32 = arith.constant 0 : i32
    %c0_i32_0 = arith.constant 0 : i32
    %c0_i32_1 = arith.constant 0 : i32
    return %c0_i32, %c0_i32_0 : i32, i32
  }
  func.func @transform_6(%arg0: i32) -> (i32, i32) {
    %c0_i32 = arith.constant 0 : i32
    %c0_i32_0 = arith.constant 0 : i32
    %c0_i32_1 = arith.constant 0 : i32
    return %c0_i32, %c0_i32_0 : i32, i32
  }
  func.func @transform_7(%arg0: i32) -> (i32, i32) {
    %c0_i32 = arith.constant 0 : i32
    %c0_i32_0 = arith.constant 0 : i32
    return %arg0, %c0_i32 : i32, i32
  }
}

</mosaic_0001>

<llo_original>
// kernel: forward.1
$region0: #{forward.1}
  #allocation0 [shape = 'u32[]', space=smem, size = 0x4, offset = 0x4, fixed_abs, tag = 'smem constant byte address 0x4 - core index']
  #allocation1 [shape = 'u32[72,128]{1,0:T(1,128)}', space=vmem, size = 0x9000, scoped, tag = 'internal scratch']
  %s0 = inlined_call_operand.vmem [shape: bf16[8,128], index: 0, kind: input, shape index: {}]
  %s1 = inlined_call_operand.hbm [shape: bf16[128,128], index: 1, kind: input, shape index: {}]
  %s2 = inlined_call_operand.vmem [shape: f32[1,128], index: 2, kind: input, shape index: {}]
  %s3 = inlined_call_operand.hbm [shape: bf16[128,128], index: 3, kind: input, shape index: {}]
  %s4 = inlined_call_operand.vmem [shape: f32[1,128], index: 4, kind: input, shape index: {}]
  %s5 = inlined_call_operand.hbm [shape: bf16[128,128], index: 5, kind: input, shape index: {}]
  %s6 = inlined_call_operand.vmem [shape: f32[1,128], index: 6, kind: input, shape index: {}]
  %s7 = inlined_call_operand.hbm [shape: f32[8,128], index: 7, kind: output, shape index: {}]
  %s8 = sld [smem:[#allocation0]]
  $region50: #{forward.1} parent=0
    _
  %s10 = ssub.s32 1, %s8
  %s11 = scalar_select 0, %s10, %s8
  $region1: #{forward.1} parent=0
    #allocation2 [shape = 'u8[32768]{0}', space=vmem, size = 0x8000, scoped, tag = 'input window, operand 1, single buffered']
    #allocation3 [shape = 's32[1]{0}', space=sflag, size = 0x4, scoped, tag = 'scoped memory for forward.1']
    #allocation4 [shape = 's32[1]{0}', space=sflag, size = 0x4, scoped, tag = 'scoped memory for forward.1']
    #allocation5 [shape = 'u8[32768]{0}', space=vmem, size = 0x8000, scoped, tag = 'input window, operand 3, single buffered']
    #allocation6 [shape = 's32[1]{0}', space=sflag, size = 0x4, scoped, tag = 'scoped memory for forward.1']
    #allocation7 [shape = 'u8[32768]{0}', space=vmem, size = 0x8000, scoped, tag = 'input window, operand 5, single buffered']
    #allocation8 [shape = 'u8[4096]{0}', space=vmem, size = 0x1000, scoped, tag = 'output window, operand 0, single buffered']
    %12 = vsyncpa [#allocation3], 0
    %13 = vsyncpa [#allocation6], 0
    %14 = vsyncpa [#allocation4], 0
    // Predicated region
    $region2: #{forward.1} parent=1 // pred_check
      _
    $region3: #{forward.1} parent=1 // pred_check_branch
      %16 = sbr.rel (0) target = $region5
    $region4: #{forward.1} parent=1 // pred_region
      _
    $region5: #{forward.1} parent=1 // pred_fallthru
      _
    // Predicated region
    $region6: #{forward.1} parent=1 // pred_check
      _
    $region7: #{forward.1} parent=1 // pred_check_branch
      %18 = sbr.rel (0) target = $region9
    $region8: #{forward.1} parent=1 // pred_region
      %20 = vsyncadd [#allocation3], 0
      %s21 = sshll.u32 %s1, 4
      %s22 = int_to_ptr.hbm [resolvable:$true] %s21
      %s23 = sshll.u32 [#allocation2], 4
      %s24 = int_to_ptr.vmem [resolvable:$true] %s23
      %29 = dma.hbm_to_vmem [thread:$0]  %s22, 1024, %s24, [#allocation3], 64, 64, 4
    $region9: #{forward.1} parent=1 // pred_fallthru
      _
    // Predicated region
    $region10: #{forward.1} parent=1 // pred_check
      _
    $region11: #{forward.1} parent=1 // pred_check_branch
      %31 = sbr.rel (0) target = $region13
    $region12: #{forward.1} parent=1 // pred_region
      _
    $region13: #{forward.1} parent=1 // pred_fallthru
      _
    // Predicated region
    $region14: #{forward.1} parent=1 // pred_check
      _
    $region15: #{forward.1} parent=1 // pred_check_branch
      %33 = sbr.rel (0) target = $region17
    $region16: #{forward.1} parent=1 // pred_region
      %35 = vsyncadd [#allocation6], 0
      %s36 = sshll.u32 %s3, 4
      %s37 = int_to_ptr.hbm [resolvable:$true] %s36
      %s38 = sshll.u32 [#allocation5], 4
      %s39 = int_to_ptr.vmem [resolvable:$true] %s38
      %44 = dma.hbm_to_vmem [thread:$0]  %s37, 1024, %s39, [#allocation6], 64, 64, 4
    $region17: #{forward.1} parent=1 // pred_fallthru
      _
    // Predicated region
    $region18: #{forward.1} parent=1 // pred_check
      _
    $region19: #{forward.1} parent=1 // pred_check_branch
      %46 = sbr.rel (0) target = $region21
    $region20: #{forward.1} parent=1 // pred_region
      _
    $region21: #{forward.1} parent=1 // pred_fallthru
      _
    // Predicated region
    $region22: #{forward.1} parent=1 // pred_check
      _
    $region23: #{forward.1} parent=1 // pred_check_branch
      %48 = sbr.rel (0) target = $region25
    $region24: #{forward.1} parent=1 // pred_region
      %50 = vsyncadd [#allocation6], 0
      %s51 = sshll.u32 %s5, 4
      %s52 = int_to_ptr.hbm [resolvable:$true] %s51
      %s53 = sshll.u32 [#allocation7], 4
      %s54 = int_to_ptr.vmem [resolvable:$true] %s53
      %59 = dma.hbm_to_vmem [thread:$0]  %s52, 1024, %s54, [#allocation6], 64, 64, 4
    $region25: #{forward.1} parent=1 // pred_fallthru
      _
    // Predicated region
    $region26: #{forward.1} parent=1 // pred_check
      _
    $region27: #{forward.1} parent=1 // pred_check_branch
      %61 = sbr.rel (0) target = $region29
    $region28: #{forward.1} parent=1 // pred_region
      _
    $region29: #{forward.1} parent=1 // pred_fallthru
      _
    // Predicated region
    $region30: #{forward.1} parent=1 // pred_check
      _
    $region31: #{forward.1} parent=1 // pred_check_branch
      %63 = sbr.rel (0) target = $region33
    $region32: #{forward.1} parent=1 // pred_region
      %65 = dma.done [#allocation3], 1024
    $region33: #{forward.1} parent=1 // pred_fallthru
      _
    // Predicated region
    $region34: #{forward.1} parent=1 // pred_check
      _
    $region35: #{forward.1} parent=1 // pred_check_branch
      %67 = sbr.rel (0) target = $region37
    $region36: #{forward.1} parent=1 // pred_region
      %69 = dma.done [#allocation6], 1024
    $region37: #{forward.1} parent=1 // pred_fallthru
      _
    // Predicated region
    $region38: #{forward.1} parent=1 // pred_check
      _
    $region39: #{forward.1} parent=1 // pred_check_branch
      %71 = sbr.rel (0) target = $region41
    $region40: #{forward.1} parent=1 // pred_region
      %73 = dma.done [#allocation6], 1024
    $region41: #{forward.1} parent=1 // pred_fallthru
      _
    %v74 = vld [vmem:[%s0] sm:$0xf]
    %v75 = vunpack.c.l.bf16 %v74
    %v76 = vld [vmem:[#allocation2] sm:$0xf]
    %v77 = vunpack.c.l.bf16 %v76
    %79 = vset.pattern.permute.xlu0 0
    %80 = vperm.xlu0 %79, %v75
    %v81 = vpop.permute.xlu0 %80
    %v83 = vperm.slane %v77, 0
    %v84 = vmul.f32 %v81, %v83
    %85 = vset.pattern.permute.xlu0 1
    %86 = vperm.xlu0 %85, %v75
    %v87 = vpop.permute.xlu0 %86
    %v89 = vperm.slane %v77, 1
    %v90 = vmul.f32 %v87, %v89
    %v91 = vadd.f32 %v84, %v90
    %v92 = vld [vmem:[%s2] sm:$0x1]
    %v94 = vperm.slane %v92, 0
    %v96 = vadd.f32 %v91, %v94
    %v97 = vmax.f32 %v96, 0.0
    %v98 = vpack.c.bf16 %v97, %v97
    %v99 = vld [vmem:[#allocation5] sm:$0xf]
    %v100 = vld [vmem:[#allocation5 + $0x4] sm:$0xf]
    %v101 = vld [vmem:[#allocation5 + $0x8] sm:$0xf]
    %v102 = vld [vmem:[#allocation5 + $0xc] sm:$0xf]
    %v103 = vld [vmem:[#allocation5 + $0x10] sm:$0xf]
    %v104 = vld [vmem:[#allocation5 + $0x14] sm:$0xf]
    %v105 = vld [vmem:[#allocation5 + $0x18] sm:$0xf]
    %v106 = vld [vmem:[#allocation5 + $0x1c] sm:$0xf]
    %v107 = vld [vmem:[#allocation5 + $0x20] sm:$0xf]
    %v108 = vld [vmem:[#allocation5 + $0x24] sm:$0xf]
    %v109 = vld [vmem:[#allocation5 + $0x28] sm:$0xf]
    %v110 = vld [vmem:[#allocation5 + $0x2c] sm:$0xf]
    %v111 = vld [vmem:[#allocation5 + $0x30] sm:$0xf]
    %v112 = vld [vmem:[#allocation5 + $0x34] sm:$0xf]
    %v113 = vld [vmem:[#allocation5 + $0x38] sm:$0xf]
    %v114 = vld [vmem:[#allocation5 + $0x3c] sm:$0xf]
    %v115 = vld [vmem:[%s4] sm:$0x1]
    %v117 = vperm.slane %v115, 0
    %v135 = vunpack.c.l.b16 %v99
    %v136 = vunpack.c.l.b16 %v100
    %v137 = vunpack.c.l.b16 %v101
    %v138 = vunpack.c.l.b16 %v102
    %v139 = vunpack.c.l.b16 %v103
    %v140 = vunpack.c.l.b16 %v104
    %v141 = vunpack.c.l.b16 %v105
    %v142 = vunpack.c.l.b16 %v106
    %v143 = vunpack.c.l.b16 %v107
    %v144 = vunpack.c.l.b16 %v108
    %v145 = vunpack.c.l.b16 %v109
    %v146 = vunpack.c.l.b16 %v110
    %v147 = vunpack.c.l.b16 %v111
    %v148 = vunpack.c.l.b16 %v112
    %v149 = vunpack.c.l.b16 %v113
    %v150 = vunpack.c.l.b16 %v114
    %v151 = vpack.c.b16 %v136, %v135
    %v152 = vpack.c.b16 %v138, %v137
    %v153 = vpack.c.b16 %v140, %v139
    %v154 = vpack.c.b16 %v142, %v141
    %v155 = vpack.c.b16 %v144, %v143
    %v156 = vpack.c.b16 %v146, %v145
    %v157 = vpack.c.b16 %v148, %v147
    %v158 = vpack.c.b16 %v150, %v149
    %167 = vmatpush.bf16.msra.mxu0 %v158
    %168 = vmatpush.bf16.msra.mxu0 %v157
    %169 = vmatpush.bf16.msra.mxu0 %v156
    %170 = vmatpush.bf16.msra.mxu0 %v155
    %171 = vmatpush.bf16.msra.mxu0 %v154
    %172 = vmatpush.bf16.msra.mxu0 %v153
    %173 = vmatpush.bf16.msra.mxu0 %v152
    %174 = vmatpush.bf16.msra.mxu0 %v151
    %175 = vmatmul.bf16.gmra.mxu0 %v98
    %v176 = vpop.f32.mrf.mxu0
    %v177 = vadd.f32 %v117, %v176
    %v178 = vpop.f32.mrf.mxu0
    %179 = vdwg.mxu0
    %v180 = vmax.f32 %v177, 0.0
    %v181 = vpack.c.bf16 %v180, %v180
    %v182 = vld [vmem:[#allocation7] sm:$0xf]
    %v183 = vld [vmem:[#allocation7 + $0x4] sm:$0xf]
    %v184 = vld [vmem:[#allocation7 + $0x8] sm:$0xf]
    %v185 = vld [vmem:[#allocation7 + $0xc] sm:$0xf]
    %v186 = vld [vmem:[#allocation7 + $0x10] sm:$0xf]
    %v187 = vld [vmem:[#allocation7 + $0x14] sm:$0xf]
    %v188 = vld [vmem:[#allocation7 + $0x18] sm:$0xf]
    %v189 = vld [vmem:[#allocation7 + $0x1c] sm:$0xf]
    %v190 = vld [vmem:[#allocation7 + $0x20] sm:$0xf]
    %v191 = vld [vmem:[#allocation7 + $0x24] sm:$0xf]
    %v192 = vld [vmem:[#allocation7 + $0x28] sm:$0xf]
    %v193 = vld [vmem:[#allocation7 + $0x2c] sm:$0xf]
    %v194 = vld [vmem:[#allocation7 + $0x30] sm:$0xf]
    %v195 = vld [vmem:[#allocation7 + $0x34] sm:$0xf]
    %v196 = vld [vmem:[#allocation7 + $0x38] sm:$0xf]
    %v197 = vld [vmem:[#allocation7 + $0x3c] sm:$0xf]
    %v198 = vld [vmem:[%s6] sm:$0x1]
    %v200 = vperm.slane %v198, 0
    %v218 = vunpack.c.l.b16 %v182
    %v219 = vunpack.c.l.b16 %v183
    %v220 = vunpack.c.l.b16 %v184
    %v221 = vunpack.c.l.b16 %v185
    %v222 = vunpack.c.l.b16 %v186
    %v223 = vunpack.c.l.b16 %v187
    %v224 = vunpack.c.l.b16 %v188
    %v225 = vunpack.c.l.b16 %v189
    %v226 = vunpack.c.l.b16 %v190
    %v227 = vunpack.c.l.b16 %v191
    %v228 = vunpack.c.l.b16 %v192
    %v229 = vunpack.c.l.b16 %v193
    %v230 = vunpack.c.l.b16 %v194
    %v231 = vunpack.c.l.b16 %v195
    %v232 = vunpack.c.l.b16 %v196
    %v233 = vunpack.c.l.b16 %v197
    %v234 = vpack.c.b16 %v219, %v218
    %v235 = vpack.c.b16 %v221, %v220
    %v236 = vpack.c.b16 %v223, %v222
    %v237 = vpack.c.b16 %v225, %v224
    %v238 = vpack.c.b16 %v227, %v226
    %v239 = vpack.c.b16 %v229, %v228
    %v240 = vpack.c.b16 %v231, %v230
    %v241 = vpack.c.b16 %v233, %v232
    %250 = vmatpush.bf16.msra.mxu0 %v241
    %251 = vmatpush.bf16.msra.mxu0 %v240
    %252 = vmatpush.bf16.msra.mxu0 %v239
    %253 = vmatpush.bf16.msra.mxu0 %v238
    %254 = vmatpush.bf16.msra.mxu0 %v237
    %255 = vmatpush.bf16.msra.mxu0 %v236
    %256 = vmatpush.bf16.msra.mxu0 %v235
    %257 = vmatpush.bf16.msra.mxu0 %v234
    %258 = vmatmul.bf16.gmra.mxu0 %v181
    %v259 = vpop.f32.mrf.mxu0
    %v260 = vadd.f32 %v200, %v259
    %v261 = vpop.f32.mrf.mxu0
    %262 = vdwg.mxu0
    %263 = vst [vmem:[#allocation8] sm:$0xff] %v260
    // Predicated region
    $region42: #{forward.1} parent=1 // pred_check
      _
    $region43: #{forward.1} parent=1 // pred_check_branch
      %265 = sbr.rel (0) target = $region45
    $region44: #{forward.1} parent=1 // pred_region
      %267 = vsyncadd [#allocation4], 0
      %s269 = sshll.u32 [#allocation8], 4
      %s270 = int_to_ptr.vmem [resolvable:$true] %s269
      %s271 = sshll.u32 %s7, 4
      %s272 = int_to_ptr.hbm [resolvable:$true] %s271
      %274 = dma.vmem_to_hbm [thread:$0]  %s270, 128, %s272, [#allocation4]
    $region45: #{forward.1} parent=1 // pred_fallthru
      _
    // Predicated region
    $region46: #{forward.1} parent=1 // pred_check
      _
    $region47: #{forward.1} parent=1 // pred_check_branch
      %276 = sbr.rel (0) target = $region49
    $region48: #{forward.1} parent=1 // pred_region
      %278 = dma.done [#allocation4], 128
    $region49: #{forward.1} parent=1 // pred_fallthru
      _
    %279 = vsyncpa [#allocation3], 1
    %280 = vsyncpa [#allocation6], 1
    %281 = vsyncpa [#allocation4], 1

</llo_original>
